<compile_context>
chip_gen: v6e
topology: v6e:2x2x1
jax: 0.10.0
libtpu: 0.0.40
codegen_flags: <defaults>
</compile_context>

<pallas_src>
import math

import jax
import jax.numpy as jnp
from jax.experimental import pallas as pl
from jax.experimental.pallas import tpu as pltpu

_LANE = 128
_VMEM_LIMIT = 32 * 1024 * 1024  # explicit; safe on v5e (16MiB default) .. v7x (64MiB phys)


def _round_up(n, m):
    return ((n + m - 1) // m) * m


# ----------------------------- Pallas kernels -------------------------------- #

def _features_kernel(x_ref, wpre_ref, bpre_ref, wmean_ref, bmean_ref, o_ref):
    """m = relu(x @ Wpre + bpre) @ Wmean + bmean   (per-node MLP, row-tiled)."""
    h = jnp.dot(x_ref[...], wpre_ref[...], preferred_element_type=jnp.float32) + bpre_ref[...]
    h = jnp.maximum(h, 0.0)
    o_ref[...] = jnp.dot(h, wmean_ref[...], preferred_element_type=jnp.float32) + bmean_ref[...]


def _propagate_kernel(a_ref, z_ref, m_ref, o_ref, acc_ref):
    """One APPNP step (alpha=0.5): z_new = (0.5*A) @ z + 0.5*m, tiled (rows, cols)."""
    @pl.when(pl.program_id(1) == 0)
    def _():
        acc_ref[...] = jnp.zeros_like(acc_ref)

    acc_ref[...] += jnp.dot(a_ref[...], z_ref[...].astype(a_ref.dtype),
                            preferred_element_type=jnp.float32)

    @pl.when(pl.program_id(1) == pl.num_programs(1) - 1)
    def _():
        o_ref[...] = acc_ref[...] + 0.5 * m_ref[...]


def _propagate_project_kernel(a_ref, z_ref, m_ref, wp_ref, bp_ref, o_ref, acc_ref):
    """Final APPNP step fused with the BatchNorm-folded projection layer."""
    @pl.when(pl.program_id(1) == 0)
    def _():
        acc_ref[...] = jnp.zeros_like(acc_ref)

    acc_ref[...] += jnp.dot(a_ref[...], z_ref[...].astype(a_ref.dtype),
                            preferred_element_type=jnp.float32)

    @pl.when(pl.program_id(1) == pl.num_programs(1) - 1)
    def _():
        z = acc_ref[...] + 0.5 * m_ref[...]
        o_ref[...] = (jnp.dot(z, wp_ref[...], preferred_element_type=jnp.float32)
                      + bp_ref[...])


# ------------------------------ Wrapper --------------------------------------- #

def vgnae_encoder_forward(x, a_hat, params, *, tm=256, tk=512, adj_dtype=jnp.float32):
    n, fin = x.shape
    hid = params["w_pre"].shape[1]
    out_ch = params["w_proj"].shape[1]
    f32 = jnp.float32

    # Lane-pad all feature dims (lane-dense stores, MXU-shaped matmuls).
    fp = _round_up(fin, _LANE)
    hp = _round_up(hid, _LANE)
    op = _round_up(out_ch, _LANE)

    # Row/col tiles for A_hat; tiny graphs collapse to one tile.
    n_lane = _round_up(n, _LANE)
    if n_lane <= tm:
        tm = tk = n_lane
    n_pad = _round_up(n, math.lcm(tm, tk))
    grid_r = n_pad // tm
    grid_c = n_pad // tk

    def pad2(arr, r, c):
        return jnp.pad(arr, ((0, r - arr.shape[0]), (0, c - arr.shape[1])))

    # ---- one-time constant folding in glue ----
    # alpha = 0.5 folded into A only (the residual 0.5*m is applied in-kernel).
    a_scaled = pad2(0.5 * a_hat, n_pad, n_pad).astype(adj_dtype)
    x_p = pad2(x.astype(f32), n_pad, fp)

    w_pre_p = pad2(params["w_pre"], fp, hp)
    b_pre_p = pad2(params["b_pre"], 1, hp)
    w_mean_p = pad2(params["w_mean"], hp, op)
    b_mean_p = pad2(params["b_mean"], 1, op)

    # BatchNorm1d (eval) folded into the projection: out = z @ (scale*Wp) + (shift@Wp + bp)
    eps = 1e-5
    scale = params["bn_gamma"][0] * jax.lax.rsqrt(params["bn_rvar"][0] + eps)   # (O,)
    shift = params["bn_beta"][0] - params["bn_rmean"][0] * scale                # (O,)
    w_proj_f = pad2(scale[:, None] * params["w_proj"], op, op)
    b_proj_f = pad2(params["b_proj"] + (shift @ params["w_proj"])[None, :], 1, op)

    cparams_1d = pltpu.CompilerParams(
        dimension_semantics=("parallel",), vmem_limit_bytes=_VMEM_LIMIT)
    cparams_2d = pltpu.CompilerParams(
        dimension_semantics=("parallel", "arbitrary"), vmem_limit_bytes=_VMEM_LIMIT)

    # ---- kernel 1: per-node MLP -> m = relu(x@Wpre+b) @ Wmean + b ----
    m = pl.pallas_call(
        _features_kernel,
        out_shape=jax.ShapeDtypeStruct((n_pad, op), f32),
        grid=(grid_r,),
        in_specs=[
            pl.BlockSpec((tm, fp), lambda i: (i, 0)),
            pl.BlockSpec((fp, hp), lambda i: (0, 0)),
            pl.BlockSpec((1, hp), lambda i: (0, 0)),
            pl.BlockSpec((hp, op), lambda i: (0, 0)),
            pl.BlockSpec((1, op), lambda i: (0, 0)),
        ],
        out_specs=pl.BlockSpec((tm, op), lambda i: (i, 0)),
        compiler_params=cparams_1d,
    )(x_p, w_pre_p, b_pre_p, w_mean_p, b_mean_p)

    # ---- kernel 2: APPNP step 1  (z1 = 0.5*A @ m + 0.5*m) ----
    z1 = pl.pallas_call(
        _propagate_kernel,
        out_shape=jax.ShapeDtypeStruct((n_pad, op), f32),
        grid=(grid_r, grid_c),
        in_specs=[
            pl.BlockSpec((tm, tk), lambda i, j: (i, j)),   # 0.5*A tile, streamed
            pl.BlockSpec((tk, op), lambda i, j: (j, 0)),   # z columns for contraction
            pl.BlockSpec((tm, op), lambda i, j: (i, 0)),   # m rows (finalize residual)
        ],
        out_specs=pl.BlockSpec((tm, op), lambda i, j: (i, 0)),
        scratch_shapes=[pltpu.VMEM((tm, op), f32)],
        compiler_params=cparams_2d,
    )(a_scaled, m, m)

    # ---- kernel 3: APPNP step 2 (z2 = 0.5*A @ z1 + 0.5*m) fused with projection ----
    out_p = pl.pallas_call(
        _propagate_project_kernel,
        out_shape=jax.ShapeDtypeStruct((n_pad, op), f32),
        grid=(grid_r, grid_c),
        in_specs=[
            pl.BlockSpec((tm, tk), lambda i, j: (i, j)),
            pl.BlockSpec((tk, op), lambda i, j: (j, 0)),
            pl.BlockSpec((tm, op), lambda i, j: (i, 0)),
            pl.BlockSpec((op, op), lambda i, j: (0, 0)),
            pl.BlockSpec((1, op), lambda i, j: (0, 0)),
        ],
        out_specs=pl.BlockSpec((tm, op), lambda i, j: (i, 0)),
        scratch_shapes=[pltpu.VMEM((tm, op), f32)],
        compiler_params=cparams_2d,
    )(a_scaled, z1, m, w_proj_f, b_proj_f)

    return out_p[:n, :out_ch]


# ------------------------------ Glue / setup --------------------------------- #

def xavier_uniform(key, fan_out, fan_in):
    """torch.nn.init.xavier_uniform_ on a (out, in) Linear weight."""
    bound = math.sqrt(6.0 / (fan_in + fan_out))
    return jax.random.uniform(key, (fan_out, fan_in), jnp.float32, -bound, bound)


def init_params(key, in_channels, hidden_channels, out_channels):
    k1, k2, k3 = jax.random.split(key, 3)
    w_pre = xavier_uniform(k1, hidden_channels, in_channels)     # (H, Fin) torch layout
    w_mean = xavier_uniform(k2, out_channels, hidden_channels)   # (O, H)
    w_proj = xavier_uniform(k3, out_channels, out_channels)      # (O, O)
    return {
        # pre-transposed to (in, out) so the kernel does x @ W
        "w_pre": jnp.asarray(w_pre.T),
        "b_pre": jnp.zeros((1, hidden_channels), jnp.float32),
        "w_mean": jnp.asarray(w_mean.T),
        "b_mean": jnp.zeros((1, out_channels), jnp.float32),
        "w_proj": jnp.asarray(w_proj.T),
        "b_proj": jnp.zeros((1, out_channels), jnp.float32),
        # BatchNorm1d defaults (affine, track_running_stats) in eval mode
        "bn_gamma": jnp.ones((1, out_channels), jnp.float32),
        "bn_beta": jnp.zeros((1, out_channels), jnp.float32),
        "bn_rmean": jnp.zeros((1, out_channels), jnp.float32),
        "bn_rvar": jnp.ones((1, out_channels), jnp.float32),
    }


def build_normalized_adjacency(edge_index, edge_weight, num_nodes):
    """Dense GCN-normalized adjacency with self loops: D^-1/2 (A + I) D^-1/2.

    A_hat[dst, src] so that (A_hat @ x)[dst] aggregates source features
    (PyG flow='source_to_target')."""
    src, dst = edge_index[0], edge_index[1]
    if edge_weight is None:
        edge_weight = jnp.ones(src.shape[0], jnp.float32)
    a = jnp.zeros((num_nodes, num_nodes), jnp.float32)
    a = a.at[dst, src].add(edge_weight)
    a = a + jnp.eye(num_nodes, dtype=jnp.float32)        # add_self_loops (fill 1.0)
    deg = jnp.sum(a, axis=1)
    dinv = jnp.where(deg > 0, 1.0 / jnp.sqrt(deg), 0.0)
    return dinv[:, None] * a * dinv[None, :]


def reference_forward(x, a_hat, p):
    """Plain-JAX f32 reference (original module semantics, eval branch)."""
    h = jnp.maximum(x @ p["w_pre"] + p["b_pre"], 0.0)
    m = h @ p["w_mean"] + p["b_mean"]
    z = m
    for _ in range(2):
        z = 0.5 * (a_hat @ z) + 0.5 * m
    z = (z - p["bn_rmean"]) / jnp.sqrt(p["bn_rvar"] + 1e-5) * p["bn_gamma"] + p["bn_beta"]
    return z @ p["w_proj"] + p["b_proj"]


# --------------------------------- Main -------------------------------------- #

if __name__ == "__main__":
    key = jax.random.PRNGKey(0)
    k_x, k_e, k_w, k_p = jax.random.split(key, 4)

    num_nodes = 16
    in_channels = 16
    hidden_channels = 32
    out_channels = 16
    num_edges = 40

    # node features
    x = jax.random.normal(k_x, (num_nodes, in_channels), jnp.float32)

    # random graph: edge_index (2, E), edge_weight (E,)
    edge_index = jax.random.randint(k_e, (2, num_edges), 0, num_nodes)
    edge_weight = jax.random.uniform(k_w, (num_edges,), jnp.float32, 0.5, 1.5)

    a_hat = build_normalized_adjacency(edge_index, edge_weight, num_nodes)
    params = init_params(k_p, in_channels, hidden_channels, out_channels)

    out = vgnae_encoder_forward(x, a_hat, params)
    out = jax.block_until_ready(out)

    ref = reference_forward(x, a_hat, params)
    assert out.shape == (num_nodes, out_channels)
    # Tolerance accommodates MXU default-precision passes on f32 operands; the
    # actual error at these scales is well below this bound.
    assert jnp.allclose(out, ref, atol=5e-2, rtol=5e-2), "Pallas kernel mismatch vs reference"

    print("KERNEL_OK")
</pallas_src>

<mosaic_0001>
module attributes {stable_mosaic.version = 11 : i64} {
  func.func @_features_kernel(%arg0: i32, %arg1: memref<128x128xf32, #tpu.memory_space<vmem>>, %arg2: memref<128x128xf32, #tpu.memory_space<vmem>>, %arg3: memref<1x128xf32, #tpu.memory_space<vmem>>, %arg4: memref<128x128xf32, #tpu.memory_space<vmem>>, %arg5: memref<1x128xf32, #tpu.memory_space<vmem>>, %arg6: memref<128x128xf32, #tpu.memory_space<vmem>>) attributes {dimension_semantics = [#tpu.dimension_semantics<parallel>], iteration_bounds = array<i64: 1>, scalar_prefetch = 0 : i64, scratch_operands = 0 : i64, tpu.core_type = #tpu.core_type<tc>, window_params = [{transform_indices = @transform_0, window_bounds = array<i64: 128, 128>}, {pipeline_mode = #tpu.pipeline_mode<synchronous>, transform_indices = @transform_1, window_bounds = array<i64: 128, 128>}, {pipeline_mode = #tpu.pipeline_mode<synchronous>, transform_indices = @transform_2, window_bounds = array<i64: 1, 128>}, {pipeline_mode = #tpu.pipeline_mode<synchronous>, transform_indices = @transform_3, window_bounds = array<i64: 128, 128>}, {pipeline_mode = #tpu.pipeline_mode<synchronous>, transform_indices = @transform_4, window_bounds = array<i64: 1, 128>}, {transform_indices = @transform_5, window_bounds = array<i64: 128, 128>}]} {
    %c0 = arith.constant 0 : index
    %c0_0 = arith.constant 0 : index
    %0 = vector.load %arg1[%c0, %c0_0] : memref<128x128xf32, #tpu.memory_space<vmem>>, vector<128x128xf32>
    %c0_1 = arith.constant 0 : index
    %c0_2 = arith.constant 0 : index
    %1 = vector.load %arg2[%c0_1, %c0_2] : memref<128x128xf32, #tpu.memory_space<vmem>>, vector<128x128xf32>
    %cst = arith.constant dense<0.000000e+00> : vector<128x128xf32>
    %2 = tpu.matmul %0, %1, %cst {dimension_numbers = #tpu.dot_dimension_numbers<[1], [0], [0], [1], [0, 0, 1, 1], [], []>} : vector<128x128xf32>, vector<128x128xf32>, vector<128x128xf32> -> vector<128x128xf32>
    %c0_3 = arith.constant 0 : index
    %c0_4 = arith.constant 0 : index
    %3 = vector.load %arg3[%c0_3, %c0_4] : memref<1x128xf32, #tpu.memory_space<vmem>>, vector<1x128xf32>
    %4 = vector.broadcast %3 : vector<1x128xf32> to vector<128x128xf32>
    %5 = arith.addf %2, %4 : vector<128x128xf32>
    %cst_5 = arith.constant 0.000000e+00 : f32
    %6 = vector.broadcast %cst_5 : f32 to vector<128x128xf32>
    %7 = arith.maximumf %5, %6 : vector<128x128xf32>
    %c0_6 = arith.constant 0 : index
    %c0_7 = arith.constant 0 : index
    %8 = vector.load %arg4[%c0_6, %c0_7] : memref<128x128xf32, #tpu.memory_space<vmem>>, vector<128x128xf32>
    %cst_8 = arith.constant dense<0.000000e+00> : vector<128x128xf32>
    %9 = tpu.matmul %7, %8, %cst_8 {dimension_numbers = #tpu.dot_dimension_numbers<[1], [0], [0], [1], [0, 0, 1, 1], [], []>} : vector<128x128xf32>, vector<128x128xf32>, vector<128x128xf32> -> vector<128x128xf32>
    %c0_9 = arith.constant 0 : index
    %c0_10 = arith.constant 0 : index
    %10 = vector.load %arg5[%c0_9, %c0_10] : memref<1x128xf32, #tpu.memory_space<vmem>>, vector<1x128xf32>
    %11 = vector.broadcast %10 : vector<1x128xf32> to vector<128x128xf32>
    %12 = arith.addf %9, %11 : vector<128x128xf32>
    %c0_11 = arith.constant 0 : index
    %c0_12 = arith.constant 0 : index
    %13 = vector.load %arg6[%c0_11, %c0_12] : memref<128x128xf32, #tpu.memory_space<vmem>>, vector<128x128xf32>
    tpu.vector_store %arg6[%c0_11, %c0_12], %12 {strides = array<i32>} : memref<128x128xf32, #tpu.memory_space<vmem>>, vector<128x128xf32>,
    return
  }
  func.func @transform_0(%arg0: i32) -> (i32, i32) {
    %c0_i32 = arith.constant 0 : i32
    %c0_i32_0 = arith.constant 0 : i32
    return %arg0, %c0_i32 : i32, i32
  }
  func.func @transform_1(%arg0: i32) -> (i32, i32) {
    %c0_i32 = arith.constant 0 : i32
    %c0_i32_0 = arith.constant 0 : i32
    %c0_i32_1 = arith.constant 0 : i32
    return %c0_i32, %c0_i32_0 : i32, i32
  }
  func.func @transform_2(%arg0: i32) -> (i32, i32) {
    %c0_i32 = arith.constant 0 : i32
    %c0_i32_0 = arith.constant 0 : i32
    %c0_i32_1 = arith.constant 0 : i32
    return %c0_i32, %c0_i32_0 : i32, i32
  }
  func.func @transform_3(%arg0: i32) -> (i32, i32) {
    %c0_i32 = arith.constant 0 : i32
    %c0_i32_0 = arith.constant 0 : i32
    %c0_i32_1 = arith.constant 0 : i32
    return %c0_i32, %c0_i32_0 : i32, i32
  }
  func.func @transform_4(%arg0: i32) -> (i32, i32) {
    %c0_i32 = arith.constant 0 : i32
    %c0_i32_0 = arith.constant 0 : i32
    %c0_i32_1 = arith.constant 0 : i32
    return %c0_i32, %c0_i32_0 : i32, i32
  }
  func.func @transform_5(%arg0: i32) -> (i32, i32) {
    %c0_i32 = arith.constant 0 : i32
    %c0_i32_0 = arith.constant 0 : i32
    return %arg0, %c0_i32 : i32, i32
  }
}

</mosaic_0001>

<llo_original>
// kernel: tpu_custom_call.1
$region0: #{tpu_custom_call.1}
  #allocation0 [shape = 'u32[]', space=smem, size = 0x4, offset = 0x4, fixed_abs, tag = 'smem constant byte address 0x4 - core index']
  #allocation1 [shape = 'u32[144,128]{1,0:T(1,128)}', space=vmem, size = 0x12000, scoped, tag = 'internal scratch']
  %s0 = inlined_call_operand.hbm [shape: f32[128,128], index: 0, kind: input, shape index: {}]
  %s1 = inlined_call_operand.hbm [shape: f32[128,128], index: 1, kind: input, shape index: {}]
  %s2 = inlined_call_operand.vmem [shape: f32[1,128], index: 2, kind: input, shape index: {}]
  %s3 = inlined_call_operand.hbm [shape: f32[128,128], index: 3, kind: input, shape index: {}]
  %s4 = inlined_call_operand.vmem [shape: f32[1,128], index: 4, kind: input, shape index: {}]
  %s5 = inlined_call_operand.hbm [shape: f32[128,128], index: 5, kind: output, shape index: {}]
  %s6 = sld [smem:[#allocation0]]
  $region42: #{tpu_custom_call.1} parent=0
    _
  %s8 = ssub.s32 1, %s6
  %s9 = scalar_select 0, %s8, %s6
  $region1: #{tpu_custom_call.1} parent=0
    #allocation2 [shape = 'u8[65536]{0}', space=vmem, size = 0x10000, scoped, tag = 'input window, operand 0, single buffered']
    #allocation3 [shape = 's32[1]{0}', space=sflag, size = 0x4, scoped, tag = 'scoped memory for tpu_custom_call.1']
    #allocation4 [shape = 's32[1]{0}', space=sflag, size = 0x4, scoped, tag = 'scoped memory for tpu_custom_call.1']
    #allocation5 [shape = 'u8[65536]{0}', space=vmem, size = 0x10000, scoped, tag = 'input window, operand 1, single buffered']
    #allocation6 [shape = 's32[1]{0}', space=sflag, size = 0x4, scoped, tag = 'scoped memory for tpu_custom_call.1']
    #allocation7 [shape = 'u8[65536]{0}', space=vmem, size = 0x10000, scoped, tag = 'input window, operand 3, single buffered']
    #allocation8 [shape = 'u8[65536]{0}', space=vmem, size = 0x10000, scoped, tag = 'output window, operand 0, single buffered']
    %10 = vsyncpa [#allocation3], 0
    %11 = vsyncpa [#allocation6], 0
    %12 = vsyncpa [#allocation4], 0
    // Predicated region
    $region2: #{tpu_custom_call.1} parent=1 // pred_check
      _
    $region3: #{tpu_custom_call.1} parent=1 // pred_check_branch
      %14 = sbr.rel (0) target = $region5
    $region4: #{tpu_custom_call.1} parent=1 // pred_region
      %s16 = ssub.s32 2048, 2048
      %17 = vsyncadd [#allocation3], %s16
      %s18 = sshll.u32 [#allocation2], 4
      %s19 = int_to_ptr.vmem [resolvable:$true] %s18
      %24 = dma.hbm_to_vmem [thread:$0]  %s0, 2048, %s19, [#allocation3], 128, 128, 8
    $region5: #{tpu_custom_call.1} parent=1 // pred_fallthru
      _
    // Predicated region
    $region6: #{tpu_custom_call.1} parent=1 // pred_check
      _
    $region7: #{tpu_custom_call.1} parent=1 // pred_check_branch
      %26 = sbr.rel (0) target = $region9
    $region8: #{tpu_custom_call.1} parent=1 // pred_region
      %s28 = ssub.s32 2048, 2048
      %29 = vsyncadd [#allocation6], %s28
      %s30 = sshll.u32 [#allocation5], 4
      %s31 = int_to_ptr.vmem [resolvable:$true] %s30
      %36 = dma.hbm_to_vmem [thread:$0]  %s1, 2048, %s31, [#allocation6], 128, 128, 8
    $region9: #{tpu_custom_call.1} parent=1 // pred_fallthru
      _
    // Predicated region
    $region10: #{tpu_custom_call.1} parent=1 // pred_check
      _
    $region11: #{tpu_custom_call.1} parent=1 // pred_check_branch
      %38 = sbr.rel (0) target = $region13
    $region12: #{tpu_custom_call.1} parent=1 // pred_region
      _
    $region13: #{tpu_custom_call.1} parent=1 // pred_fallthru
      _
    // Predicated region
    $region14: #{tpu_custom_call.1} parent=1 // pred_check
      _
    $region15: #{tpu_custom_call.1} parent=1 // pred_check_branch
      %40 = sbr.rel (0) target = $region17
    $region16: #{tpu_custom_call.1} parent=1 // pred_region
      %s42 = ssub.s32 2048, 2048
      %43 = vsyncadd [#allocation6], %s42
      %s44 = sshll.u32 [#allocation7], 4
      %s45 = int_to_ptr.vmem [resolvable:$true] %s44
      %50 = dma.hbm_to_vmem [thread:$0]  %s3, 2048, %s45, [#allocation6], 128, 128, 8
    $region17: #{tpu_custom_call.1} parent=1 // pred_fallthru
      _
    // Predicated region
    $region18: #{tpu_custom_call.1} parent=1 // pred_check
      _
    $region19: #{tpu_custom_call.1} parent=1 // pred_check_branch
      %52 = sbr.rel (0) target = $region21
    $region20: #{tpu_custom_call.1} parent=1 // pred_region
      _
    $region21: #{tpu_custom_call.1} parent=1 // pred_fallthru
      _
    // Predicated region
    $region22: #{tpu_custom_call.1} parent=1 // pred_check
      _
    $region23: #{tpu_custom_call.1} parent=1 // pred_check_branch
      %54 = sbr.rel (0) target = $region25
    $region24: #{tpu_custom_call.1} parent=1 // pred_region
      %55 = dma.done [#allocation3], 2048
    $region25: #{tpu_custom_call.1} parent=1 // pred_fallthru
      _
    // Predicated region
    $region26: #{tpu_custom_call.1} parent=1 // pred_check
      _
    $region27: #{tpu_custom_call.1} parent=1 // pred_check_branch
      %57 = sbr.rel (0) target = $region29
    $region28: #{tpu_custom_call.1} parent=1 // pred_region
      %58 = dma.done [#allocation6], 2048
    $region29: #{tpu_custom_call.1} parent=1 // pred_fallthru
      _
    // Predicated region
    $region30: #{tpu_custom_call.1} parent=1 // pred_check
      _
    $region31: #{tpu_custom_call.1} parent=1 // pred_check_branch
      %60 = sbr.rel (0) target = $region33
    $region32: #{tpu_custom_call.1} parent=1 // pred_region
      %61 = dma.done [#allocation6], 2048
    $region33: #{tpu_custom_call.1} parent=1 // pred_fallthru
      _
    %v62 = vld [vmem:[#allocation2] sm:$0xff]
    %v63 = vld [vmem:[#allocation2 + $0x8] sm:$0xff]
    %v64 = vld [vmem:[#allocation2 + $0x10] sm:$0xff]
    %v65 = vld [vmem:[#allocation2 + $0x18] sm:$0xff]
    %v66 = vld [vmem:[#allocation2 + $0x20] sm:$0xff]
    %v67 = vld [vmem:[#allocation2 + $0x28] sm:$0xff]
    %v68 = vld [vmem:[#allocation2 + $0x30] sm:$0xff]
    %v69 = vld [vmem:[#allocation2 + $0x38] sm:$0xff]
    %v70 = vld [vmem:[#allocation2 + $0x40] sm:$0xff]
    %v71 = vld [vmem:[#allocation2 + $0x48] sm:$0xff]
    %v72 = vld [vmem:[#allocation2 + $0x50] sm:$0xff]
    %v73 = vld [vmem:[#allocation2 + $0x58] sm:$0xff]
    %v74 = vld [vmem:[#allocation2 + $0x60] sm:$0xff]
    %v75 = vld [vmem:[#allocation2 + $0x68] sm:$0xff]
    %v76 = vld [vmem:[#allocation2 + $0x70] sm:$0xff]
    %v77 = vld [vmem:[#allocation2 + $0x78] sm:$0xff]
    %v78 = vld [vmem:[#allocation5] sm:$0xff]
    %v79 = vld [vmem:[#allocation5 + $0x8] sm:$0xff]
    %v80 = vld [vmem:[#allocation5 + $0x10] sm:$0xff]
    %v81 = vld [vmem:[#allocation5 + $0x18] sm:$0xff]
    %v82 = vld [vmem:[#allocation5 + $0x20] sm:$0xff]
    %v83 = vld [vmem:[#allocation5 + $0x28] sm:$0xff]
    %v84 = vld [vmem:[#allocation5 + $0x30] sm:$0xff]
    %v85 = vld [vmem:[#allocation5 + $0x38] sm:$0xff]
    %v86 = vld [vmem:[#allocation5 + $0x40] sm:$0xff]
    %v87 = vld [vmem:[#allocation5 + $0x48] sm:$0xff]
    %v88 = vld [vmem:[#allocation5 + $0x50] sm:$0xff]
    %v89 = vld [vmem:[#allocation5 + $0x58] sm:$0xff]
    %v90 = vld [vmem:[#allocation5 + $0x60] sm:$0xff]
    %v91 = vld [vmem:[#allocation5 + $0x68] sm:$0xff]
    %v92 = vld [vmem:[#allocation5 + $0x70] sm:$0xff]
    %v93 = vld [vmem:[#allocation5 + $0x78] sm:$0xff]
    %v94 = vld [vmem:[%s2] sm:$0x1]
    %v96 = vlaneseq
    %v97 = vshrl.u32 %v96, 7
    %v98 = vsub.s32 0, %v97
    %v99 = vrot.slane %v94, %v98
    %101 = vmatprep.subr.mxu0 0.0
    %102 = vmatpush1.msra.mxu0 %v93
    %103 = vmatprep.subr.mxu0 0.0
    %104 = vmatpush1.msra.mxu0 %v92
    %105 = vmatprep.subr.mxu0 0.0
    %106 = vmatpush1.msra.mxu0 %v91
    %107 = vmatprep.subr.mxu0 0.0
    %108 = vmatpush1.msra.mxu0 %v90
    %109 = vmatprep.subr.mxu0 0.0
    %110 = vmatpush1.msra.mxu0 %v89
    %111 = vmatprep.subr.mxu0 0.0
    %112 = vmatpush1.msra.mxu0 %v88
    %113 = vmatprep.subr.mxu0 0.0
    %114 = vmatpush1.msra.mxu0 %v87
    %115 = vmatprep.subr.mxu0 0.0
    %116 = vmatpush1.msra.mxu0 %v86
    %117 = vmatprep.subr.mxu0 0.0
    %118 = vmatpush1.msra.mxu0 %v85
    %119 = vmatprep.subr.mxu0 0.0
    %120 = vmatpush1.msra.mxu0 %v84
    %121 = vmatprep.subr.mxu0 0.0
    %122 = vmatpush1.msra.mxu0 %v83
    %123 = vmatprep.subr.mxu0 0.0
    %124 = vmatpush1.msra.mxu0 %v82
    %125 = vmatprep.subr.mxu0 0.0
    %126 = vmatpush1.msra.mxu0 %v81
    %127 = vmatprep.subr.mxu0 0.0
    %128 = vmatpush1.msra.mxu0 %v80
    %129 = vmatprep.subr.mxu0 0.0
    %130 = vmatpush1.msra.mxu0 %v79
    %131 = vmatprep.subr.mxu0 0.0
    %132 = vmatpush1.msra.mxu0 %v78
    %133 = vmatprep.subr.mxu0 0.0
    %134 = vmatpush2.msra.mxu0 0.0
    %135 = vmatprep.subr.mxu0 0.0
    %136 = vmatpush2.msra.mxu0 0.0
    %137 = vmatprep.subr.mxu0 0.0
    %138 = vmatpush2.msra.mxu0 0.0
    %139 = vmatprep.subr.mxu0 0.0
    %140 = vmatpush2.msra.mxu0 0.0
    %141 = vmatprep.subr.mxu0 0.0
    %142 = vmatpush2.msra.mxu0 0.0
    %143 = vmatprep.subr.mxu0 0.0
    %144 = vmatpush2.msra.mxu0 0.0
    %145 = vmatprep.subr.mxu0 0.0
    %146 = vmatpush2.msra.mxu0 0.0
    %147 = vmatprep.subr.mxu0 0.0
    %148 = vmatpush2.msra.mxu0 0.0
    %149 = vmatprep.subr.mxu0 0.0
    %150 = vmatpush2.msra.mxu0 0.0
    %151 = vmatprep.subr.mxu0 0.0
    %152 = vmatpush2.msra.mxu0 0.0
    %153 = vmatprep.subr.mxu0 0.0
    %154 = vmatpush2.msra.mxu0 0.0
    %155 = vmatprep.subr.mxu0 0.0
    %156 = vmatpush2.msra.mxu0 0.0
    %157 = vmatprep.subr.mxu0 0.0
    %158 = vmatpush2.msra.mxu0 0.0
    %159 = vmatprep.subr.mxu0 0.0
    %160 = vmatpush2.msra.mxu0 0.0
    %161 = vmatprep.subr.mxu0 0.0
    %162 = vmatpush2.msra.mxu0 0.0
    %163 = vmatprep.subr.mxu0 0.0
    %164 = vmatpush2.msra.mxu0 0.0
    %165 = vmatprep.mubr.f32.mxu0 0.0
    %166 = vmatmul.mubr.f32.gmra.mxu0 %v62
    %v167 = vpop.f32.mrf.mxu0
    %v168 = vadd.f32 %v99, %v167
    %v169 = vpop.f32.mrf.mxu0
    %170 = vmatprep.mubr.f32.mxu0 0.0
    %171 = vmatmul.mubr.f32.gmra.mxu0 %v63
    %v172 = vpop.f32.mrf.mxu0
    %v173 = vadd.f32 %v99, %v172
    %v174 = vpop.f32.mrf.mxu0
    %175 = vmatprep.mubr.f32.mxu0 0.0
    %176 = vmatmul.mubr.f32.gmra.mxu0 %v64
    %v177 = vpop.f32.mrf.mxu0
    %v178 = vadd.f32 %v99, %v177
    %v179 = vpop.f32.mrf.mxu0
    %180 = vmatprep.mubr.f32.mxu0 0.0
    %181 = vmatmul.mubr.f32.gmra.mxu0 %v65
    %v182 = vpop.f32.mrf.mxu0
    %v183 = vadd.f32 %v99, %v182
    %v184 = vpop.f32.mrf.mxu0
    %185 = vmatprep.mubr.f32.mxu0 0.0
    %186 = vmatmul.mubr.f32.gmra.mxu0 %v66
    %v187 = vpop.f32.mrf.mxu0
    %v188 = vadd.f32 %v99, %v187
    %v189 = vpop.f32.mrf.mxu0
    %190 = vmatprep.mubr.f32.mxu0 0.0
    %191 = vmatmul.mubr.f32.gmra.mxu0 %v67
    %v192 = vpop.f32.mrf.mxu0
    %v193 = vadd.f32 %v99, %v192
    %v194 = vpop.f32.mrf.mxu0
    %195 = vmatprep.mubr.f32.mxu0 0.0
    %196 = vmatmul.mubr.f32.gmra.mxu0 %v68
    %v197 = vpop.f32.mrf.mxu0
    %v198 = vadd.f32 %v99, %v197
    %v199 = vpop.f32.mrf.mxu0
    %200 = vmatprep.mubr.f32.mxu0 0.0
    %201 = vmatmul.mubr.f32.gmra.mxu0 %v69
    %v202 = vpop.f32.mrf.mxu0
    %v203 = vadd.f32 %v99, %v202
    %v204 = vpop.f32.mrf.mxu0
    %205 = vmatprep.mubr.f32.mxu0 0.0
    %206 = vmatmul.mubr.f32.gmra.mxu0 %v70
    %v207 = vpop.f32.mrf.mxu0
    %v208 = vadd.f32 %v99, %v207
    %v209 = vpop.f32.mrf.mxu0
    %210 = vmatprep.mubr.f32.mxu0 0.0
    %211 = vmatmul.mubr.f32.gmra.mxu0 %v71
    %v212 = vpop.f32.mrf.mxu0
    %v213 = vadd.f32 %v99, %v212
    %v214 = vpop.f32.mrf.mxu0
    %215 = vmatprep.mubr.f32.mxu0 0.0
    %216 = vmatmul.mubr.f32.gmra.mxu0 %v72
    %v217 = vpop.f32.mrf.mxu0
    %v218 = vadd.f32 %v99, %v217
    %v219 = vpop.f32.mrf.mxu0
    %220 = vmatprep.mubr.f32.mxu0 0.0
    %221 = vmatmul.mubr.f32.gmra.mxu0 %v73
    %v222 = vpop.f32.mrf.mxu0
    %v223 = vadd.f32 %v99, %v222
    %v224 = vpop.f32.mrf.mxu0
    %225 = vmatprep.mubr.f32.mxu0 0.0
    %226 = vmatmul.mubr.f32.gmra.mxu0 %v74
    %v227 = vpop.f32.mrf.mxu0
    %v228 = vadd.f32 %v99, %v227
    %v229 = vpop.f32.mrf.mxu0
    %230 = vmatprep.mubr.f32.mxu0 0.0
    %231 = vmatmul.mubr.f32.gmra.mxu0 %v75
    %v232 = vpop.f32.mrf.mxu0
    %v233 = vadd.f32 %v99, %v232
    %v234 = vpop.f32.mrf.mxu0
    %235 = vmatprep.mubr.f32.mxu0 0.0
    %236 = vmatmul.mubr.f32.gmra.mxu0 %v76
    %v237 = vpop.f32.mrf.mxu0
    %v238 = vadd.f32 %v99, %v237
    %v239 = vpop.f32.mrf.mxu0
    %240 = vmatprep.mubr.f32.mxu0 0.0
    %241 = vmatmul.mubr.f32.gmra.mxu0 %v77
    %v242 = vpop.f32.mrf.mxu0
    %v243 = vadd.f32 %v99, %v242
    %v244 = vpop.f32.mrf.mxu0
    %245 = vdwg.mxu0
    %v246 = vmax.f32 %v168, 0.0
    %v247 = vmax.f32 %v173, 0.0
    %v248 = vmax.f32 %v178, 0.0
    %v249 = vmax.f32 %v183, 0.0
    %v250 = vmax.f32 %v188, 0.0
    %v251 = vmax.f32 %v193, 0.0
    %v252 = vmax.f32 %v198, 0.0
    %v253 = vmax.f32 %v203, 0.0
    %v254 = vmax.f32 %v208, 0.0
    %v255 = vmax.f32 %v213, 0.0
    %v256 = vmax.f32 %v218, 0.0
    %v257 = vmax.f32 %v223, 0.0
    %v258 = vmax.f32 %v228, 0.0
    %v259 = vmax.f32 %v233, 0.0
    %v260 = vmax.f32 %v238, 0.0
    %v261 = vmax.f32 %v243, 0.0
    %v262 = vld [vmem:[#allocation7] sm:$0xff]
    %v263 = vld [vmem:[#allocation7 + $0x8] sm:$0xff]
    %v264 = vld [vmem:[#allocation7 + $0x10] sm:$0xff]
    %v265 = vld [vmem:[#allocation7 + $0x18] sm:$0xff]
    %v266 = vld [vmem:[#allocation7 + $0x20] sm:$0xff]
    %v267 = vld [vmem:[#allocation7 + $0x28] sm:$0xff]
    %v268 = vld [vmem:[#allocation7 + $0x30] sm:$0xff]
    %v269 = vld [vmem:[#allocation7 + $0x38] sm:$0xff]
    %v270 = vld [vmem:[#allocation7 + $0x40] sm:$0xff]
    %v271 = vld [vmem:[#allocation7 + $0x48] sm:$0xff]
    %v272 = vld [vmem:[#allocation7 + $0x50] sm:$0xff]
    %v273 = vld [vmem:[#allocation7 + $0x58] sm:$0xff]
    %v274 = vld [vmem:[#allocation7 + $0x60] sm:$0xff]
    %v275 = vld [vmem:[#allocation7 + $0x68] sm:$0xff]
    %v276 = vld [vmem:[#allocation7 + $0x70] sm:$0xff]
    %v277 = vld [vmem:[#allocation7 + $0x78] sm:$0xff]
    %v278 = vld [vmem:[%s4] sm:$0x1]
    %v280 = vlaneseq
    %v281 = vshrl.u32 %v280, 7
    %v282 = vsub.s32 0, %v281
    %v283 = vrot.slane %v278, %v282
    %285 = vmatprep.subr.mxu0 0.0
    %286 = vmatpush1.msra.mxu0 %v277
    %287 = vmatprep.subr.mxu0 0.0
    %288 = vmatpush1.msra.mxu0 %v276
    %289 = vmatprep.subr.mxu0 0.0
    %290 = vmatpush1.msra.mxu0 %v275
    %291 = vmatprep.subr.mxu0 0.0
    %292 = vmatpush1.msra.mxu0 %v274
    %293 = vmatprep.subr.mxu0 0.0
    %294 = vmatpush1.msra.mxu0 %v273
    %295 = vmatprep.subr.mxu0 0.0
    %296 = vmatpush1.msra.mxu0 %v272
    %297 = vmatprep.subr.mxu0 0.0
    %298 = vmatpush1.msra.mxu0 %v271
    %299 = vmatprep.subr.mxu0 0.0
    %300 = vmatpush1.msra.mxu0 %v270
    %301 = vmatprep.subr.mxu0 0.0
    %302 = vmatpush1.msra.mxu0 %v269
    %303 = vmatprep.subr.mxu0 0.0
    %304 = vmatpush1.msra.mxu0 %v268
    %305 = vmatprep.subr.mxu0 0.0
    %306 = vmatpush1.msra.mxu0 %v267
    %307 = vmatprep.subr.mxu0 0.0
    %308 = vmatpush1.msra.mxu0 %v266
    %309 = vmatprep.subr.mxu0 0.0
    %310 = vmatpush1.msra.mxu0 %v265
    %311 = vmatprep.subr.mxu0 0.0
    %312 = vmatpush1.msra.mxu0 %v264
    %313 = vmatprep.subr.mxu0 0.0
    %314 = vmatpush1.msra.mxu0 %v263
    %315 = vmatprep.subr.mxu0 0.0
    %316 = vmatpush1.msra.mxu0 %v262
    %317 = vmatprep.subr.mxu0 0.0
    %318 = vmatpush2.msra.mxu0 0.0
    %319 = vmatprep.subr.mxu0 0.0
    %320 = vmatpush2.msra.mxu0 0.0
    %321 = vmatprep.subr.mxu0 0.0
    %322 = vmatpush2.msra.mxu0 0.0
    %323 = vmatprep.subr.mxu0 0.0
    %324 = vmatpush2.msra.mxu0 0.0
    %325 = vmatprep.subr.mxu0 0.0
    %326 = vmatpush2.msra.mxu0 0.0
    %327 = vmatprep.subr.mxu0 0.0
    %328 = vmatpush2.msra.mxu0 0.0
    %329 = vmatprep.subr.mxu0 0.0
    %330 = vmatpush2.msra.mxu0 0.0
    %331 = vmatprep.subr.mxu0 0.0
    %332 = vmatpush2.msra.mxu0 0.0
    %333 = vmatprep.subr.mxu0 0.0
    %334 = vmatpush2.msra.mxu0 0.0
    %335 = vmatprep.subr.mxu0 0.0
    %336 = vmatpush2.msra.mxu0 0.0
    %337 = vmatprep.subr.mxu0 0.0
    %338 = vmatpush2.msra.mxu0 0.0
    %339 = vmatprep.subr.mxu0 0.0
    %340 = vmatpush2.msra.mxu0 0.0
    %341 = vmatprep.subr.mxu0 0.0
    %342 = vmatpush2.msra.mxu0 0.0
    %343 = vmatprep.subr.mxu0 0.0
    %344 = vmatpush2.msra.mxu0 0.0
    %345 = vmatprep.subr.mxu0 0.0
    %346 = vmatpush2.msra.mxu0 0.0
    %347 = vmatprep.subr.mxu0 0.0
    %348 = vmatpush2.msra.mxu0 0.0
    %349 = vmatprep.mubr.f32.mxu0 0.0
    %350 = vmatmul.mubr.f32.gmra.mxu0 %v246
    %v351 = vpop.f32.mrf.mxu0
    %v352 = vadd.f32 %v283, %v351
    %v353 = vpop.f32.mrf.mxu0
    %354 = vmatprep.mubr.f32.mxu0 0.0
    %355 = vmatmul.mubr.f32.gmra.mxu0 %v247
    %v356 = vpop.f32.mrf.mxu0
    %v357 = vadd.f32 %v283, %v356
    %v358 = vpop.f32.mrf.mxu0
    %359 = vmatprep.mubr.f32.mxu0 0.0
    %360 = vmatmul.mubr.f32.gmra.mxu0 %v248
    %v361 = vpop.f32.mrf.mxu0
    %v362 = vadd.f32 %v283, %v361
    %v363 = vpop.f32.mrf.mxu0
    %364 = vmatprep.mubr.f32.mxu0 0.0
    %365 = vmatmul.mubr.f32.gmra.mxu0 %v249
    %v366 = vpop.f32.mrf.mxu0
    %v367 = vadd.f32 %v283, %v366
    %v368 = vpop.f32.mrf.mxu0
    %369 = vmatprep.mubr.f32.mxu0 0.0
    %370 = vmatmul.mubr.f32.gmra.mxu0 %v250
    %v371 = vpop.f32.mrf.mxu0
    %v372 = vadd.f32 %v283, %v371
    %v373 = vpop.f32.mrf.mxu0
    %374 = vmatprep.mubr.f32.mxu0 0.0
    %375 = vmatmul.mubr.f32.gmra.mxu0 %v251
    %v376 = vpop.f32.mrf.mxu0
    %v377 = vadd.f32 %v283, %v376
    %v378 = vpop.f32.mrf.mxu0
    %379 = vmatprep.mubr.f32.mxu0 0.0
    %380 = vmatmul.mubr.f32.gmra.mxu0 %v252
    %v381 = vpop.f32.mrf.mxu0
    %v382 = vadd.f32 %v283, %v381
    %v383 = vpop.f32.mrf.mxu0
    %384 = vmatprep.mubr.f32.mxu0 0.0
    %385 = vmatmul.mubr.f32.gmra.mxu0 %v253
    %v386 = vpop.f32.mrf.mxu0
    %v387 = vadd.f32 %v283, %v386
    %v388 = vpop.f32.mrf.mxu0
    %389 = vmatprep.mubr.f32.mxu0 0.0
    %390 = vmatmul.mubr.f32.gmra.mxu0 %v254
    %v391 = vpop.f32.mrf.mxu0
    %v392 = vadd.f32 %v283, %v391
    %v393 = vpop.f32.mrf.mxu0
    %394 = vmatprep.mubr.f32.mxu0 0.0
    %395 = vmatmul.mubr.f32.gmra.mxu0 %v255
    %v396 = vpop.f32.mrf.mxu0
    %v397 = vadd.f32 %v283, %v396
    %v398 = vpop.f32.mrf.mxu0
    %399 = vmatprep.mubr.f32.mxu0 0.0
    %400 = vmatmul.mubr.f32.gmra.mxu0 %v256
    %v401 = vpop.f32.mrf.mxu0
    %v402 = vadd.f32 %v283, %v401
    %v403 = vpop.f32.mrf.mxu0
    %404 = vmatprep.mubr.f32.mxu0 0.0
    %405 = vmatmul.mubr.f32.gmra.mxu0 %v257
    %v406 = vpop.f32.mrf.mxu0
    %v407 = vadd.f32 %v283, %v406
    %v408 = vpop.f32.mrf.mxu0
    %409 = vmatprep.mubr.f32.mxu0 0.0
    %410 = vmatmul.mubr.f32.gmra.mxu0 %v258
    %v411 = vpop.f32.mrf.mxu0
    %v412 = vadd.f32 %v283, %v411
    %v413 = vpop.f32.mrf.mxu0
    %414 = vmatprep.mubr.f32.mxu0 0.0
    %415 = vmatmul.mubr.f32.gmra.mxu0 %v259
    %v416 = vpop.f32.mrf.mxu0
    %v417 = vadd.f32 %v283, %v416
    %v418 = vpop.f32.mrf.mxu0
    %419 = vmatprep.mubr.f32.mxu0 0.0
    %420 = vmatmul.mubr.f32.gmra.mxu0 %v260
    %v421 = vpop.f32.mrf.mxu0
    %v422 = vadd.f32 %v283, %v421
    %v423 = vpop.f32.mrf.mxu0
    %424 = vmatprep.mubr.f32.mxu0 0.0
    %425 = vmatmul.mubr.f32.gmra.mxu0 %v261
    %v426 = vpop.f32.mrf.mxu0
    %v427 = vadd.f32 %v283, %v426
    %v428 = vpop.f32.mrf.mxu0
    %429 = vdwg.mxu0
    %430 = vst [vmem:[#allocation8] sm:$0xff] %v352
    %431 = vst [vmem:[#allocation8 + $0x8] sm:$0xff] %v357
    %432 = vst [vmem:[#allocation8 + $0x10] sm:$0xff] %v362
    %433 = vst [vmem:[#allocation8 + $0x18] sm:$0xff] %v367
    %434 = vst [vmem:[#allocation8 + $0x20] sm:$0xff] %v372
    %435 = vst [vmem:[#allocation8 + $0x28] sm:$0xff] %v377
    %436 = vst [vmem:[#allocation8 + $0x30] sm:$0xff] %v382
    %437 = vst [vmem:[#allocation8 + $0x38] sm:$0xff] %v387
    %438 = vst [vmem:[#allocation8 + $0x40] sm:$0xff] %v392
    %439 = vst [vmem:[#allocation8 + $0x48] sm:$0xff] %v397
    %440 = vst [vmem:[#allocation8 + $0x50] sm:$0xff] %v402
    %441 = vst [vmem:[#allocation8 + $0x58] sm:$0xff] %v407
    %442 = vst [vmem:[#allocation8 + $0x60] sm:$0xff] %v412
    %443 = vst [vmem:[#allocation8 + $0x68] sm:$0xff] %v417
    %444 = vst [vmem:[#allocation8 + $0x70] sm:$0xff] %v422
    %445 = vst [vmem:[#allocation8 + $0x78] sm:$0xff] %v427
    // Predicated region
    $region34: #{tpu_custom_call.1} parent=1 // pred_check
      _
    $region35: #{tpu_custom_call.1} parent=1 // pred_check_branch
      %447 = sbr.rel (0) target = $region37
    $region36: #{tpu_custom_call.1} parent=1 // pred_region
      %s449 = ssub.s32 2048, 2048
      %450 = vsyncadd [#allocation4], %s449
      %s451 = sshll.u32 [#allocation8], 4
      %s452 = int_to_ptr.vmem [resolvable:$true] %s451
      %457 = dma.vmem_to_hbm [thread:$0]  %s452, 2048, %s5, [#allocation4], 128, 128, 8
    $region37: #{tpu_custom_call.1} parent=1 // pred_fallthru
      _
    // Predicated region
    $region38: #{tpu_custom_call.1} parent=1 // pred_check
      _
    $region39: #{tpu_custom_call.1} parent=1 // pred_check_branch
      %459 = sbr.rel (0) target = $region41
    $region40: #{tpu_custom_call.1} parent=1 // pred_region
      %460 = dma.done [#allocation4], 2048
    $region41: #{tpu_custom_call.1} parent=1 // pred_fallthru
      _
    %461 = vsyncpa [#allocation3], 1
    %462 = vsyncpa [#allocation6], 1
    %463 = vsyncpa [#allocation4], 1

</llo_original>
